<compile_context>
chip_gen: v5e
topology: v5e:2x2
jax: 0.10.0
libtpu: 0.0.40
codegen_flags: <defaults>
</compile_context>

<pallas_src>
import functools

import jax
import jax.numpy as jnp
from jax import lax
from jax.experimental import pallas as pl
from jax.experimental.pallas import tpu as pltpu


_VMEM_LIMIT = 32 * 1024 * 1024          # <= physical on v5e/v6e (128 MiB) and v7x (64 MiB)
_MM_PRECISION = lax.Precision.HIGHEST   # torch.mm is true fp32


# ------------------------------------------------------------------ #
# Plain Gram:  G = scale * (X - shift) @ (X - shift).T ,  X = (C, K)
# ------------------------------------------------------------------ #
def _gram_kernel(shift, scale, tc, K, masked, x_ref, o_ref):
    i = pl.program_id(0)          # output row block  ("parallel")
    k = pl.program_id(1)          # K reduction       ("arbitrary")
    nk = pl.num_programs(1)
    C, tk = x_ref.shape

    @pl.when(k == 0)
    def _init():
        o_ref[...] = jnp.zeros_like(o_ref)

    f = x_ref[...] - shift                                   # (C, tk)
    if masked:                                               # ragged last K tile
        col = k * tk + lax.broadcasted_iota(jnp.int32, (C, tk), 1)
        f = jnp.where(col < K, f, 0.0)

    if tc == C:
        a = f
    else:
        row0 = pl.multiple_of(i * tc, 8)
        a = x_ref[pl.ds(row0, tc), :] - shift                # (tc, tk)
        if masked:
            cola = k * tk + lax.broadcasted_iota(jnp.int32, (tc, tk), 1)
            a = jnp.where(cola < K, a, 0.0)

    o_ref[...] += lax.dot_general(
        a, f, (((1,), (1,)), ((), ())),
        preferred_element_type=jnp.float32, precision=_MM_PRECISION)

    @pl.when(k == nk - 1)
    def _finish():
        o_ref[...] *= scale


def gram_pallas(x_flat, shift, scale, *, row_split=None, max_k_tile=None):
    """scale * (x_flat - shift) @ (x_flat - shift).T with one pass over x."""
    C, K = x_flat.shape

    # Big K tiles (budget ~2 MiB per pipeline buffer), 128-aligned; if the
    # whole flattened axis fits one tile, take it in one block.
    if max_k_tile is None:
        per_buf = 2 * 1024 * 1024
        max_k_tile = max(128, (per_buf // (4 * C)) // 128 * 128)
    else:
        max_k_tile = max(128, (max_k_tile // 128) * 128)
    if K <= max_k_tile:
        tk, nk, masked = K, 1, False
    else:
        tk = max_k_tile
        nk = pl.cdiv(K, tk)
        masked = (K % tk) != 0

    # Output row split: lets the two v7x TensorCores each take half of G's
    # rows when the kernel is MXU-bound (large C).  It re-reads X once per
    # extra block, so it is only enabled by default for large C.
    if row_split is None:
        row_split = 2 if (C >= 512 and C % 16 == 0) else 1
    assert C % row_split == 0
    tc = C // row_split
    assert row_split == 1 or tc % 8 == 0

    kernel = functools.partial(_gram_kernel, float(shift), float(scale),
                               tc, K, masked)
    return pl.pallas_call(
        kernel,
        out_shape=jax.ShapeDtypeStruct((C, C), jnp.float32),
        grid_spec=pltpu.PrefetchScalarGridSpec(
            num_scalar_prefetch=0,
            grid=(row_split, nk),
            in_specs=[pl.BlockSpec((C, tk), lambda i, k: (0, k))],
            out_specs=pl.BlockSpec((tc, C), lambda i, k: (i, 0)),
        ),
        compiler_params=pltpu.CompilerParams(
            dimension_semantics=("parallel", "arbitrary"),
            vmem_limit_bytes=_VMEM_LIMIT),
    )(x_flat)


# ------------------------------------------------------------------ #
# Improved Gram (fused Gx + Gy), reads the feature map exactly once.
#   returns scale * [ (L-s)(R-s)^T + (U-s)(D-s)^T ]
# Tiles are whole image rows (tk = block_rows * W), so the +4 column shift
# never crosses a tile; the +4 row shift is handled with a 4-row VMEM carry.
# ------------------------------------------------------------------ #
def _improved_gram_kernel(shift, scale, W, x_ref, o_ref, carry_ref):
    i = pl.program_id(0)
    nb = pl.num_programs(0)
    C, tk = x_ref.shape                        # tk = block_rows * W

    @pl.when(i == 0)
    def _init():
        o_ref[...] = jnp.zeros_like(o_ref)

    f = x_ref[...] - shift                                   # (C, tk)

    # Gx: pairs (h, w) <-> (h, w+4).  Mask out w >= W-4 and contract against
    # the +4-shifted columns (pairs never leave a row, hence never this tile).
    col_in_row = lax.broadcasted_iota(jnp.int32, (C, tk), 1) % W
    fx = jnp.where(col_in_row < W - 4, f, 0.0)
    gx = lax.dot_general(fx[:, : tk - 4], f[:, 4:],
                         (((1,), (1,)), ((), ())),
                         preferred_element_type=jnp.float32,
                         precision=_MM_PRECISION)

    # Gy: pairs (h, w) <-> (h+4, w) with both rows inside this tile.
    gy = lax.dot_general(f[:, : tk - 4 * W], f[:, 4 * W:],
                         (((1,), (1,)), ((), ())),
                         preferred_element_type=jnp.float32,
                         precision=_MM_PRECISION)
    o_ref[...] += gx + gy

    # Gy: pairs whose first row lives in the previous tile's last 4 rows.
    @pl.when(i > 0)
    def _cross_tile():
        o_ref[...] += lax.dot_general(
            carry_ref[...], f[:, : 4 * W], (((1,), (1,)), ((), ())),
            preferred_element_type=jnp.float32, precision=_MM_PRECISION)

    # Stash this tile's last 4 rows (already shifted) for the next step.
    carry_ref[...] = f[:, tk - 4 * W:]

    @pl.when(i == nb - 1)
    def _finish():
        o_ref[...] *= scale


def _pick_block_rows(C, H, W, max_block_rows=None, max_bytes=4 << 20):
    """Largest divisor of H giving a lane-aligned, VMEM-friendly row block."""
    divisors = [d for d in range(1, H + 1) if H % d == 0]
    valid = [d for d in divisors if d == H or (d >= 8 and (d * W) % 128 == 0)]
    if max_block_rows is not None:
        capped = [d for d in valid if d <= max_block_rows]
        valid = capped or valid
    fitting = [d for d in valid if C * d * W * 4 <= max_bytes]
    return max(fitting) if fitting else min(valid)


def improved_gram_pallas(x, shift, scale, *, max_block_rows=None):
    B, C, H, W = x.shape
    assert B == 1, "GramMatrix .view(C, H*W) requires batch == 1"
    assert H > 4 and W > 4, "improved gram needs spatial dims > 4"

    th = _pick_block_rows(C, H, W, max_block_rows)
    nb = H // th
    tk = th * W
    x_flat = x.reshape(C, H * W)                 # contiguous: no copy

    kernel = functools.partial(_improved_gram_kernel, float(shift),
                               float(scale), int(W))
    return pl.pallas_call(
        kernel,
        out_shape=jax.ShapeDtypeStruct((C, C), jnp.float32),
        grid_spec=pltpu.PrefetchScalarGridSpec(
            num_scalar_prefetch=0,
            grid=(nb,),
            in_specs=[pl.BlockSpec((C, tk), lambda i: (0, i))],
            out_specs=pl.BlockSpec((C, C), lambda i: (0, 0)),
            scratch_shapes=[pltpu.VMEM((C, 4 * W), jnp.float32)],
        ),
        compiler_params=pltpu.CompilerParams(
            dimension_semantics=("arbitrary",),
            vmem_limit_bytes=_VMEM_LIMIT),
    )(x_flat)


# ------------------------------------------------------------------ #
# MSE loss kernel:  mean((G - target)^2)  ->  (1,1) SMEM scalar
# ------------------------------------------------------------------ #
def _mse_kernel(g_ref, t_ref, o_ref):
    d = g_ref[...] - t_ref[...]
    o_ref[0, 0] = jnp.sum(d * d) * (1.0 / d.size)


def mse_pallas(g, target):
    out = pl.pallas_call(
        _mse_kernel,
        out_shape=jax.ShapeDtypeStruct((1, 1), jnp.float32),
        in_specs=[pl.BlockSpec(memory_space=pltpu.MemorySpace.VMEM),
                  pl.BlockSpec(memory_space=pltpu.MemorySpace.VMEM)],
        out_specs=pl.BlockSpec(memory_space=pltpu.MemorySpace.SMEM),
    )(g, target)
    return out[0, 0]


# ------------------------------------------------------------------ #
# StyleLoss module (forward-only, JAX/Pallas)
# ------------------------------------------------------------------ #
class StyleLossPallas:
    def __init__(self, strength, normalize, improve_gram=False):
        self.strength = float(strength)
        self.normalize = normalize
        self.improve_gram = improve_gram
        self.mode = "None"
        self.target = None
        self.blend_weight = None
        self.G = None
        self.loss = None

    def __call__(self, x):
        x = x.astype(jnp.float32)
        B, C, H, W = x.shape
        assert B == 1, "GramMatrix .view(C, H*W) requires batch == 1"
        nelement = x.size

        if self.improve_gram:
            # G = 0.5*(Gx+Gy)/nelement; scale folded into the kernel epilogue.
            G = improved_gram_pallas(x, 5.0, 0.5 / nelement)
        else:
            G = gram_pallas(x.reshape(C, H * W), 10.0, 1.0 / nelement)
        self.G = G

        if self.mode == "capture":
            if self.blend_weight is None:
                self.target = jax.lax.stop_gradient(G)
            elif self.target is None or self.target.size == 0:
                self.target = jax.lax.stop_gradient(G) * self.blend_weight
            else:
                self.target = self.target + self.blend_weight * jax.lax.stop_gradient(G)
        elif self.mode == "loss":
            loss = mse_pallas(G, self.target)
            # TODO(synk): ScaleGradients only rescales gradients in backward;
            # the forward pass is an identity, so nothing to do here.
            self.loss = self.strength * loss

        return x


# ------------------------------------------------------------------ #
# Pure-JAX reference for correctness checking
# ------------------------------------------------------------------ #
def _gram_ref(x, improve_gram):
    x = x.astype(jnp.float32)
    B, C, H, W = x.shape
    hp = lax.Precision.HIGHEST
    if improve_gram:
        l = x[:, :, :, :-4].reshape(C, -1) - 5.0
        r = x[:, :, :, 4:].reshape(C, -1) - 5.0
        u = x[:, :, :-4, :].reshape(C, -1) - 5.0
        d = x[:, :, 4:, :].reshape(C, -1) - 5.0
        G = 0.5 * (jnp.dot(l, r.T, precision=hp) + jnp.dot(u, d.T, precision=hp))
    else:
        f = x.reshape(C, -1) - 10.0
        G = jnp.dot(f, f.T, precision=hp)
    return G / x.size


if __name__ == "__main__":
    key = jax.random.PRNGKey(0)

    def check(name, got, want, rtol=1e-4, atol=1e-4):
        ok = bool(jnp.allclose(got, want, rtol=rtol, atol=atol))
        if not ok:
            err = float(jnp.max(jnp.abs(got - want)))
            print(f"MISMATCH {name}: max abs err {err}")
        return ok

    all_ok = True

    # 1) End-to-end module test (capture + loss), both gram variants.
    shape = (1, 8, 16, 16)
    k1, k2, key = jax.random.split(key, 3)
    x_style = jax.random.normal(k1, shape, dtype=jnp.float32)
    x_input = jax.random.normal(k2, shape, dtype=jnp.float32)

    for improve in (False, True):
        mod = StyleLossPallas(strength=0.5, normalize=True, improve_gram=improve)
        mod.mode = "capture"
        out = jax.block_until_ready(mod(x_style))
        mod.mode = "loss"
        out = jax.block_until_ready(mod(x_input))
        loss = jax.block_until_ready(mod.loss)

        G_ref_t = _gram_ref(x_style, improve)
        G_ref_i = _gram_ref(x_input, improve)
        loss_ref = 0.5 * jnp.mean((G_ref_i - G_ref_t) ** 2)

        all_ok &= check(f"G (improve_gram={improve})", mod.G, G_ref_i)
        all_ok &= check(f"loss (improve_gram={improve})", loss, loss_ref,
                        rtol=2e-3, atol=1e-5)
        all_ok &= bool(jnp.array_equal(out, x_input))   # forward returns input

    # 2) Improved gram, multi-tile path with the 4-row carry exercised.
    k1, key = jax.random.split(key)
    x = jax.random.normal(k1, (1, 8, 32, 16), dtype=jnp.float32)
    got = jax.block_until_ready(
        improved_gram_pallas(x, 5.0, 0.5 / x.size, max_block_rows=8))
    all_ok &= check("improved gram carry path", got, _gram_ref(x, True))

    # 3) Plain gram, multi-tile K reduction with a ragged (masked) tail.
    k1, key = jax.random.split(key)
    x = jax.random.normal(k1, (1, 8, 40, 40), dtype=jnp.float32)   # K = 1600
    got = jax.block_until_ready(
        gram_pallas(x.reshape(8, 1600), 10.0, 1.0 / x.size, max_k_tile=1024))
    all_ok &= check("plain gram ragged-K path", got, _gram_ref(x, False))

    # 4) Plain gram with the output row split (v7x two-core style path).
    k1, key = jax.random.split(key)
    x = jax.random.normal(k1, (1, 16, 16, 16), dtype=jnp.float32)
    got = jax.block_until_ready(
        gram_pallas(x.reshape(16, 256), 10.0, 1.0 / x.size, row_split=2))
    all_ok &= check("plain gram row-split path", got, _gram_ref(x, False))

    if all_ok:
        print("KERNEL_OK")
    else:
        print("KERNEL_MISMATCH")
</pallas_src>

<mosaic_0001>
module attributes {stable_mosaic.version = 11 : i64} {
  func.func @_gram_kernel(%arg0: i32, %arg1: i32, %arg2: memref<8x256xf32, #tpu.memory_space<vmem>>, %arg3: memref<8x8xf32, #tpu.memory_space<vmem>>) attributes {dimension_semantics = [#tpu.dimension_semantics<parallel>, #tpu.dimension_semantics<arbitrary>], iteration_bounds = array<i64: 1, 1>, scalar_prefetch = 0 : i64, scratch_operands = 0 : i64, tpu.core_type = #tpu.core_type<tc>, window_params = [{transform_indices = @transform_0, window_bounds = array<i64: 8, 256>}, {transform_indices = @transform_1, window_bounds = array<i64: 8, 8>}]} {
    %c0_i32 = arith.constant 0 : i32
    %0 = arith.cmpi eq, %arg1, %c0_i32 : i32
    %1 = arith.extui %0 : i1 to i32
    %c0_i32_0 = arith.constant 0 : i32
    %2 = arith.cmpi ne, %1, %c0_i32_0 : i32
    scf.if %2 {
      %cst_9 = arith.constant 0.000000e+00 : f32
      %13 = vector.broadcast %cst_9 : f32 to vector<8x8xf32>
      %c0_10 = arith.constant 0 : index
      %c0_11 = arith.constant 0 : index
      %14 = vector.load %arg3[%c0_10, %c0_11] : memref<8x8xf32, #tpu.memory_space<vmem>>, vector<8x8xf32>
      tpu.vector_store %arg3[%c0_10, %c0_11], %13 {strides = array<i32>} : memref<8x8xf32, #tpu.memory_space<vmem>>, vector<8x8xf32>,
    } else {
    }
    %c0 = arith.constant 0 : index
    %c0_1 = arith.constant 0 : index
    %3 = vector.load %arg2[%c0, %c0_1] : memref<8x256xf32, #tpu.memory_space<vmem>>, vector<8x256xf32>
    %cst = arith.constant 1.000000e+01 : f32
    %4 = vector.broadcast %cst : f32 to vector<8x256xf32>
    %5 = arith.subf %3, %4 : vector<8x256xf32>
    %c0_2 = arith.constant 0 : index
    %c0_3 = arith.constant 0 : index
    %6 = vector.load %arg3[%c0_2, %c0_3] : memref<8x8xf32, #tpu.memory_space<vmem>>, vector<8x8xf32>
    %cst_4 = arith.constant dense<0.000000e+00> : vector<8x8xf32>
    %7 = tpu.matmul %5, %5, %cst_4 {dimension_numbers = #tpu.dot_dimension_numbers<[1], [1], [0], [0], [0, 0, 1, 0], [], []>, precision = #tpu.contract_precision<fp32>} : vector<8x256xf32>, vector<8x256xf32>, vector<8x8xf32> -> vector<8x8xf32>
    %8 = arith.addf %6, %7 : vector<8x8xf32>
    %c0_5 = arith.constant 0 : index
    %c0_6 = arith.constant 0 : index
    %9 = vector.load %arg3[%c0_5, %c0_6] : memref<8x8xf32, #tpu.memory_space<vmem>>, vector<8x8xf32>
    tpu.vector_store %arg3[%c0_5, %c0_6], %8 {strides = array<i32>} : memref<8x8xf32, #tpu.memory_space<vmem>>, vector<8x8xf32>,
    %c0_i32_7 = arith.constant 0 : i32
    %10 = arith.cmpi eq, %arg1, %c0_i32_7 : i32
    %11 = arith.extui %10 : i1 to i32
    %c0_i32_8 = arith.constant 0 : i32
    %12 = arith.cmpi ne, %11, %c0_i32_8 : i32
    scf.if %12 {
      %c0_9 = arith.constant 0 : index
      %c0_10 = arith.constant 0 : index
      %13 = vector.load %arg3[%c0_9, %c0_10] : memref<8x8xf32, #tpu.memory_space<vmem>>, vector<8x8xf32>
      %cst_11 = arith.constant 4.8828125E-4 : f32
      %14 = vector.broadcast %cst_11 : f32 to vector<8x8xf32>
      %15 = arith.mulf %13, %14 : vector<8x8xf32>
      %c0_12 = arith.constant 0 : index
      %c0_13 = arith.constant 0 : index
      %16 = vector.load %arg3[%c0_12, %c0_13] : memref<8x8xf32, #tpu.memory_space<vmem>>, vector<8x8xf32>
      tpu.vector_store %arg3[%c0_12, %c0_13], %15 {strides = array<i32>} : memref<8x8xf32, #tpu.memory_space<vmem>>, vector<8x8xf32>,
    } else {
    }
    return
  }
  func.func @transform_0(%arg0: i32, %arg1: i32) -> (i32, i32) {
    %c0_i32 = arith.constant 0 : i32
    %c0_i32_0 = arith.constant 0 : i32
    return %c0_i32, %arg1 : i32, i32
  }
  func.func @transform_1(%arg0: i32, %arg1: i32) -> (i32, i32) {
    %c0_i32 = arith.constant 0 : i32
    %c0_i32_0 = arith.constant 0 : i32
    return %arg0, %c0_i32 : i32, i32
  }
}

</mosaic_0001>

<llo_original>
// kernel: tpu_custom_call.1
$region0: #{tpu_custom_call.1}
  #allocation0 [shape = 'u32[]', space=smem, size = 0x4, offset = 0x4, fixed_abs, tag = 'smem constant byte address 0x4 - core index']
  #allocation1 [shape = 'u32[72,128]{1,0:T(1,128)}', space=vmem, size = 0x9000, scoped, tag = 'internal scratch']
  %s0 = inlined_call_operand.hbm [shape: f32[8,256], index: 0, kind: input, shape index: {}]
  %s1 = inlined_call_operand.hbm [shape: f32[8,8], index: 1, kind: output, shape index: {}]
  %s2 = sld [smem:[#allocation0]]
  $region26: #{tpu_custom_call.1} parent=0
    _
  %s4 = ssub.s32 1, %s2
  %s5 = scalar_select 0, %s4, %s2
  $region1: #{tpu_custom_call.1} parent=0
    #allocation2 [shape = 'u8[8192]{0}', space=vmem, size = 0x2000, scoped, tag = 'input window, operand 0, single buffered']
    #allocation3 [shape = 's32[1]{0}', space=sflag, size = 0x4, scoped, tag = 'scoped memory for tpu_custom_call.1']
    #allocation4 [shape = 's32[1]{0}', space=sflag, size = 0x4, scoped, tag = 'scoped memory for tpu_custom_call.1']
    #allocation5 [shape = 'u8[4096]{0}', space=vmem, size = 0x1000, scoped, tag = 'output window, operand 0, single buffered']
    %6 = vsyncpa [#allocation3], 0
    %7 = vsyncpa [#allocation4], 0
    // Predicated region
    $region2: #{tpu_custom_call.1} parent=1 // pred_check
      _
    $region3: #{tpu_custom_call.1} parent=1 // pred_check_branch
      %9 = sbr.rel (0) target = $region5
    $region4: #{tpu_custom_call.1} parent=1 // pred_region
      %11 = vsyncadd [#allocation3], 0
      %s13 = sshll.u32 %s0, 4
      %s14 = int_to_ptr.hbm [resolvable:$true] %s13
      %s15 = sshll.u32 [#allocation2], 4
      %s16 = int_to_ptr.vmem [resolvable:$true] %s15
      %18 = dma.hbm_to_vmem [thread:$0]  %s14, 256, %s16, [#allocation3]
    $region5: #{tpu_custom_call.1} parent=1 // pred_fallthru
      _
    // Predicated region
    $region6: #{tpu_custom_call.1} parent=1 // pred_check
      _
    $region7: #{tpu_custom_call.1} parent=1 // pred_check_branch
      %20 = sbr.rel (0) target = $region9
    $region8: #{tpu_custom_call.1} parent=1 // pred_region
      %22 = dma.done [#allocation3], 256
    $region9: #{tpu_custom_call.1} parent=1 // pred_fallthru
      _
    %p23 = scmp.eq.s32.totalorder 0, 0
    // Predicated region
    $region10: #{tpu_custom_call.1} parent=1 // pred_check
      %p24 = pneg %p23
    $region11: #{tpu_custom_call.1} parent=1 // pred_check_branch
      %26 = sbr.rel (%p24) target = $region13
    $region12: #{tpu_custom_call.1} parent=1 // pred_region
      %vm27 = vcmask 64512
      %28 = vst.msk [vmem:[#allocation5] sm:$0xff] %vm27, 0.0
    $region13: #{tpu_custom_call.1} parent=1 // pred_fallthru
      _
    %v29 = vld [vmem:[#allocation2] sm:$0xff]
    %v30 = vld [vmem:[#allocation2 + $0x8] sm:$0xff]
    %v31 = vsub.f32 %v29, 10.0
    %v32 = vsub.f32 %v30, 10.0
    %v33 = vld [vmem:[#allocation5] sm:$0xff]
    %34 = vmatpush.xpose.msra.mxu0 0.0
    %35 = vmatpush.xpose.msra.mxu0 0.0
    %36 = vmatpush.xpose.msra.mxu0 0.0
    %37 = vmatpush.xpose.msra.mxu0 0.0
    %38 = vmatpush.xpose.msra.mxu0 0.0
    %39 = vmatpush.xpose.msra.mxu0 0.0
    %40 = vmatpush.xpose.msra.mxu0 0.0
    %41 = vmatpush.xpose.msra.mxu0 0.0
    %42 = vmatpush.xpose.msra.mxu0 0.0
    %43 = vmatpush.xpose.msra.mxu0 0.0
    %44 = vmatpush.xpose.msra.mxu0 0.0
    %45 = vmatpush.xpose.msra.mxu0 0.0
    %46 = vmatpush.xpose.msra.mxu0 0.0
    %47 = vmatpush.xpose.msra.mxu0 0.0
    %48 = vmatpush.xpose.msra.mxu0 0.0
    %v49 = vand.u32 %v31, 4294901760
    %50 = vmatpush.xpose.msra.mxu0 %v49
    %v51 = vand.u32 %v31, 4294901760
    %v52 = vsub.f32 %v31, %v51
    %v53 = vand.u32 %v52, 4294901760
    %v54 = vsub.f32 %v52, %v53
    %v55 = vand.u32 %v54, 4294901760
    %56 = vmatmul.f32.gmra.mxu0 %v55
    %v57 = vpop.f32.mrf.mxu0
    %v58 = vadd.f32 0.0, %v57
    %59 = vdwg.mxu0
    %60 = vmatpush.xpose.msra.mxu0 0.0
    %61 = vmatpush.xpose.msra.mxu0 0.0
    %62 = vmatpush.xpose.msra.mxu0 0.0
    %63 = vmatpush.xpose.msra.mxu0 0.0
    %64 = vmatpush.xpose.msra.mxu0 0.0
    %65 = vmatpush.xpose.msra.mxu0 0.0
    %66 = vmatpush.xpose.msra.mxu0 0.0
    %67 = vmatpush.xpose.msra.mxu0 0.0
    %68 = vmatpush.xpose.msra.mxu0 0.0
    %69 = vmatpush.xpose.msra.mxu0 0.0
    %70 = vmatpush.xpose.msra.mxu0 0.0
    %71 = vmatpush.xpose.msra.mxu0 0.0
    %72 = vmatpush.xpose.msra.mxu0 0.0
    %73 = vmatpush.xpose.msra.mxu0 0.0
    %74 = vmatpush.xpose.msra.mxu0 0.0
    %v75 = vand.u32 %v31, 4294901760
    %v76 = vsub.f32 %v31, %v75
    %v77 = vand.u32 %v76, 4294901760
    %v78 = vsub.f32 %v76, %v77
    %v79 = vand.u32 %v78, 4294901760
    %80 = vmatpush.xpose.msra.mxu0 %v79
    %v81 = vand.u32 %v31, 4294901760
    %82 = vmatmul.f32.gmra.mxu0 %v81
    %v83 = vpop.f32.mrf.mxu0
    %v84 = vadd.f32 %v58, %v83
    %85 = vdwg.mxu0
    %86 = vmatpush.xpose.msra.mxu0 0.0
    %87 = vmatpush.xpose.msra.mxu0 0.0
    %88 = vmatpush.xpose.msra.mxu0 0.0
    %89 = vmatpush.xpose.msra.mxu0 0.0
    %90 = vmatpush.xpose.msra.mxu0 0.0
    %91 = vmatpush.xpose.msra.mxu0 0.0
    %92 = vmatpush.xpose.msra.mxu0 0.0
    %93 = vmatpush.xpose.msra.mxu0 0.0
    %94 = vmatpush.xpose.msra.mxu0 0.0
    %95 = vmatpush.xpose.msra.mxu0 0.0
    %96 = vmatpush.xpose.msra.mxu0 0.0
    %97 = vmatpush.xpose.msra.mxu0 0.0
    %98 = vmatpush.xpose.msra.mxu0 0.0
    %99 = vmatpush.xpose.msra.mxu0 0.0
    %100 = vmatpush.xpose.msra.mxu0 0.0
    %v101 = vand.u32 %v31, 4294901760
    %v102 = vsub.f32 %v31, %v101
    %103 = vmatpush.xpose.msra.mxu0 %v102
    %v104 = vand.u32 %v31, 4294901760
    %v105 = vsub.f32 %v31, %v104
    %106 = vmatmul.f32.gmra.mxu0 %v105
    %v107 = vpop.f32.mrf.mxu0
    %v108 = vadd.f32 %v84, %v107
    %109 = vdwg.mxu0
    %110 = vmatpush.xpose.msra.mxu0 0.0
    %111 = vmatpush.xpose.msra.mxu0 0.0
    %112 = vmatpush.xpose.msra.mxu0 0.0
    %113 = vmatpush.xpose.msra.mxu0 0.0
    %114 = vmatpush.xpose.msra.mxu0 0.0
    %115 = vmatpush.xpose.msra.mxu0 0.0
    %116 = vmatpush.xpose.msra.mxu0 0.0
    %117 = vmatpush.xpose.msra.mxu0 0.0
    %118 = vmatpush.xpose.msra.mxu0 0.0
    %119 = vmatpush.xpose.msra.mxu0 0.0
    %120 = vmatpush.xpose.msra.mxu0 0.0
    %121 = vmatpush.xpose.msra.mxu0 0.0
    %122 = vmatpush.xpose.msra.mxu0 0.0
    %123 = vmatpush.xpose.msra.mxu0 0.0
    %124 = vmatpush.xpose.msra.mxu0 0.0
    %v125 = vand.u32 %v31, 4294901760
    %126 = vmatpush.xpose.msra.mxu0 %v125
    %v127 = vand.u32 %v31, 4294901760
    %v128 = vsub.f32 %v31, %v127
    %v129 = vand.u32 %v128, 4294901760
    %130 = vmatmul.f32.gmra.mxu0 %v129
    %v131 = vpop.f32.mrf.mxu0
    %v132 = vadd.f32 %v108, %v131
    %133 = vdwg.mxu0
    %134 = vmatpush.xpose.msra.mxu0 0.0
    %135 = vmatpush.xpose.msra.mxu0 0.0
    %136 = vmatpush.xpose.msra.mxu0 0.0
    %137 = vmatpush.xpose.msra.mxu0 0.0
    %138 = vmatpush.xpose.msra.mxu0 0.0
    %139 = vmatpush.xpose.msra.mxu0 0.0
    %140 = vmatpush.xpose.msra.mxu0 0.0
    %141 = vmatpush.xpose.msra.mxu0 0.0
    %142 = vmatpush.xpose.msra.mxu0 0.0
    %143 = vmatpush.xpose.msra.mxu0 0.0
    %144 = vmatpush.xpose.msra.mxu0 0.0
    %145 = vmatpush.xpose.msra.mxu0 0.0
    %146 = vmatpush.xpose.msra.mxu0 0.0
    %147 = vmatpush.xpose.msra.mxu0 0.0
    %148 = vmatpush.xpose.msra.mxu0 0.0
    %v149 = vand.u32 %v31, 4294901760
    %v150 = vsub.f32 %v31, %v149
    %v151 = vand.u32 %v150, 4294901760
    %152 = vmatpush.xpose.msra.mxu0 %v151
    %v153 = vand.u32 %v31, 4294901760
    %154 = vmatmul.f32.gmra.mxu0 %v153
    %v155 = vpop.f32.mrf.mxu0
    %v156 = vadd.f32 %v132, %v155
    %157 = vdwg.mxu0
    %158 = vmatpush.xpose.msra.mxu0 0.0
    %159 = vmatpush.xpose.msra.mxu0 0.0
    %160 = vmatpush.xpose.msra.mxu0 0.0
    %161 = vmatpush.xpose.msra.mxu0 0.0
    %162 = vmatpush.xpose.msra.mxu0 0.0
    %163 = vmatpush.xpose.msra.mxu0 0.0
    %164 = vmatpush.xpose.msra.mxu0 0.0
    %165 = vmatpush.xpose.msra.mxu0 0.0
    %166 = vmatpush.xpose.msra.mxu0 0.0
    %167 = vmatpush.xpose.msra.mxu0 0.0
    %168 = vmatpush.xpose.msra.mxu0 0.0
    %169 = vmatpush.xpose.msra.mxu0 0.0
    %170 = vmatpush.xpose.msra.mxu0 0.0
    %171 = vmatpush.xpose.msra.mxu0 0.0
    %172 = vmatpush.xpose.msra.mxu0 0.0
    %v173 = vand.u32 %v31, 4294901760
    %174 = vmatpush.xpose.msra.mxu0 %v173
    %v175 = vand.u32 %v31, 4294901760
    %176 = vmatmul.f32.gmra.mxu0 %v175
    %v177 = vpop.f32.mrf.mxu0
    %v178 = vadd.f32 %v156, %v177
    %179 = vdwg.mxu0
    %180 = vmatpush.xpose.msra.mxu0 0.0
    %181 = vmatpush.xpose.msra.mxu0 0.0
    %182 = vmatpush.xpose.msra.mxu0 0.0
    %183 = vmatpush.xpose.msra.mxu0 0.0
    %184 = vmatpush.xpose.msra.mxu0 0.0
    %185 = vmatpush.xpose.msra.mxu0 0.0
    %186 = vmatpush.xpose.msra.mxu0 0.0
    %187 = vmatpush.xpose.msra.mxu0 0.0
    %188 = vmatpush.xpose.msra.mxu0 0.0
    %189 = vmatpush.xpose.msra.mxu0 0.0
    %190 = vmatpush.xpose.msra.mxu0 0.0
    %191 = vmatpush.xpose.msra.mxu0 0.0
    %192 = vmatpush.xpose.msra.mxu0 0.0
    %193 = vmatpush.xpose.msra.mxu0 0.0
    %194 = vmatpush.xpose.msra.mxu0 0.0
    %v195 = vand.u32 %v32, 4294901760
    %196 = vmatpush.xpose.msra.mxu0 %v195
    %v197 = vand.u32 %v32, 4294901760
    %v198 = vsub.f32 %v32, %v197
    %v199 = vand.u32 %v198, 4294901760
    %v200 = vsub.f32 %v198, %v199
    %v201 = vand.u32 %v200, 4294901760
    %202 = vmatmul.f32.gmra.mxu0 %v201
    %v203 = vpop.f32.mrf.mxu0
    %v204 = vadd.f32 %v178, %v203
    %205 = vdwg.mxu0
    %206 = vmatpush.xpose.msra.mxu0 0.0
    %207 = vmatpush.xpose.msra.mxu0 0.0
    %208 = vmatpush.xpose.msra.mxu0 0.0
    %209 = vmatpush.xpose.msra.mxu0 0.0
    %210 = vmatpush.xpose.msra.mxu0 0.0
    %211 = vmatpush.xpose.msra.mxu0 0.0
    %212 = vmatpush.xpose.msra.mxu0 0.0
    %213 = vmatpush.xpose.msra.mxu0 0.0
    %214 = vmatpush.xpose.msra.mxu0 0.0
    %215 = vmatpush.xpose.msra.mxu0 0.0
    %216 = vmatpush.xpose.msra.mxu0 0.0
    %217 = vmatpush.xpose.msra.mxu0 0.0
    %218 = vmatpush.xpose.msra.mxu0 0.0
    %219 = vmatpush.xpose.msra.mxu0 0.0
    %220 = vmatpush.xpose.msra.mxu0 0.0
    %v221 = vand.u32 %v32, 4294901760
    %v222 = vsub.f32 %v32, %v221
    %v223 = vand.u32 %v222, 4294901760
    %v224 = vsub.f32 %v222, %v223
    %v225 = vand.u32 %v224, 4294901760
    %226 = vmatpush.xpose.msra.mxu0 %v225
    %v227 = vand.u32 %v32, 4294901760
    %228 = vmatmul.f32.gmra.mxu0 %v227
    %v229 = vpop.f32.mrf.mxu0
    %v230 = vadd.f32 %v204, %v229
    %231 = vdwg.mxu0
    %232 = vmatpush.xpose.msra.mxu0 0.0
    %233 = vmatpush.xpose.msra.mxu0 0.0
    %234 = vmatpush.xpose.msra.mxu0 0.0
    %235 = vmatpush.xpose.msra.mxu0 0.0
    %236 = vmatpush.xpose.msra.mxu0 0.0
    %237 = vmatpush.xpose.msra.mxu0 0.0
    %238 = vmatpush.xpose.msra.mxu0 0.0
    %239 = vmatpush.xpose.msra.mxu0 0.0
    %240 = vmatpush.xpose.msra.mxu0 0.0
    %241 = vmatpush.xpose.msra.mxu0 0.0
    %242 = vmatpush.xpose.msra.mxu0 0.0
    %243 = vmatpush.xpose.msra.mxu0 0.0
    %244 = vmatpush.xpose.msra.mxu0 0.0
    %245 = vmatpush.xpose.msra.mxu0 0.0
    %246 = vmatpush.xpose.msra.mxu0 0.0
    %v247 = vand.u32 %v32, 4294901760
    %v248 = vsub.f32 %v32, %v247
    %249 = vmatpush.xpose.msra.mxu0 %v248
    %v250 = vand.u32 %v32, 4294901760
    %v251 = vsub.f32 %v32, %v250
    %252 = vmatmul.f32.gmra.mxu0 %v251
    %v253 = vpop.f32.mrf.mxu0
    %v254 = vadd.f32 %v230, %v253
    %255 = vdwg.mxu0
    %256 = vmatpush.xpose.msra.mxu0 0.0
    %257 = vmatpush.xpose.msra.mxu0 0.0
    %258 = vmatpush.xpose.msra.mxu0 0.0
    %259 = vmatpush.xpose.msra.mxu0 0.0
    %260 = vmatpush.xpose.msra.mxu0 0.0
    %261 = vmatpush.xpose.msra.mxu0 0.0
    %262 = vmatpush.xpose.msra.mxu0 0.0
    %263 = vmatpush.xpose.msra.mxu0 0.0
    %264 = vmatpush.xpose.msra.mxu0 0.0
    %265 = vmatpush.xpose.msra.mxu0 0.0
    %266 = vmatpush.xpose.msra.mxu0 0.0
    %267 = vmatpush.xpose.msra.mxu0 0.0
    %268 = vmatpush.xpose.msra.mxu0 0.0
    %269 = vmatpush.xpose.msra.mxu0 0.0
    %270 = vmatpush.xpose.msra.mxu0 0.0
    %v271 = vand.u32 %v32, 4294901760
    %272 = vmatpush.xpose.msra.mxu0 %v271
    %v273 = vand.u32 %v32, 4294901760
    %v274 = vsub.f32 %v32, %v273
    %v275 = vand.u32 %v274, 4294901760
    %276 = vmatmul.f32.gmra.mxu0 %v275
    %v277 = vpop.f32.mrf.mxu0
    %v278 = vadd.f32 %v254, %v277
    %279 = vdwg.mxu0
    %280 = vmatpush.xpose.msra.mxu0 0.0
    %281 = vmatpush.xpose.msra.mxu0 0.0
    %282 = vmatpush.xpose.msra.mxu0 0.0
    %283 = vmatpush.xpose.msra.mxu0 0.0
    %284 = vmatpush.xpose.msra.mxu0 0.0
    %285 = vmatpush.xpose.msra.mxu0 0.0
    %286 = vmatpush.xpose.msra.mxu0 0.0
    %287 = vmatpush.xpose.msra.mxu0 0.0
    %288 = vmatpush.xpose.msra.mxu0 0.0
    %289 = vmatpush.xpose.msra.mxu0 0.0
    %290 = vmatpush.xpose.msra.mxu0 0.0
    %291 = vmatpush.xpose.msra.mxu0 0.0
    %292 = vmatpush.xpose.msra.mxu0 0.0
    %293 = vmatpush.xpose.msra.mxu0 0.0
    %294 = vmatpush.xpose.msra.mxu0 0.0
    %v295 = vand.u32 %v32, 4294901760
    %v296 = vsub.f32 %v32, %v295
    %v297 = vand.u32 %v296, 4294901760
    %298 = vmatpush.xpose.msra.mxu0 %v297
    %v299 = vand.u32 %v32, 4294901760
    %300 = vmatmul.f32.gmra.mxu0 %v299
    %v301 = vpop.f32.mrf.mxu0
    %v302 = vadd.f32 %v278, %v301
    %303 = vdwg.mxu0
    %304 = vmatpush.xpose.msra.mxu0 0.0
    %305 = vmatpush.xpose.msra.mxu0 0.0
    %306 = vmatpush.xpose.msra.mxu0 0.0
    %307 = vmatpush.xpose.msra.mxu0 0.0
    %308 = vmatpush.xpose.msra.mxu0 0.0
    %309 = vmatpush.xpose.msra.mxu0 0.0
    %310 = vmatpush.xpose.msra.mxu0 0.0
    %311 = vmatpush.xpose.msra.mxu0 0.0
    %312 = vmatpush.xpose.msra.mxu0 0.0
    %313 = vmatpush.xpose.msra.mxu0 0.0
    %314 = vmatpush.xpose.msra.mxu0 0.0
    %315 = vmatpush.xpose.msra.mxu0 0.0
    %316 = vmatpush.xpose.msra.mxu0 0.0
    %317 = vmatpush.xpose.msra.mxu0 0.0
    %318 = vmatpush.xpose.msra.mxu0 0.0
    %v319 = vand.u32 %v32, 4294901760
    %320 = vmatpush.xpose.msra.mxu0 %v319
    %v321 = vand.u32 %v32, 4294901760
    %322 = vmatmul.f32.gmra.mxu0 %v321
    %v323 = vpop.f32.mrf.mxu0
    %v324 = vadd.f32 %v302, %v323
    %325 = vdwg.mxu0
    %v326 = vadd.f32 %v33, %v324
    %vm327 = vcmask 64512
    %328 = vst.msk [vmem:[#allocation5] sm:$0xff] %vm327, %v326
    // Predicated region
    $region14: #{tpu_custom_call.1} parent=1 // pred_check
      %p329 = pneg %p23
    $region15: #{tpu_custom_call.1} parent=1 // pred_check_branch
      %331 = sbr.rel (%p329) target = $region17
    $region16: #{tpu_custom_call.1} parent=1 // pred_region
      %v332 = vld [vmem:[#allocation5] sm:$0xff]
      %v333 = vmul.f32 %v332, 0.00048828125
      %334 = vst.msk [vmem:[#allocation5] sm:$0xff] %vm327, %v333
    $region17: #{tpu_custom_call.1} parent=1 // pred_fallthru
      _
    // Predicated region
    $region18: #{tpu_custom_call.1} parent=1 // pred_check
      _
    $region19: #{tpu_custom_call.1} parent=1 // pred_check_branch
      %336 = sbr.rel (0) target = $region21
    $region20: #{tpu_custom_call.1} parent=1 // pred_region
      %338 = vsyncadd [#allocation4], 0
      %s340 = sshll.u32 [#allocation5], 4
      %s341 = int_to_ptr.vmem [resolvable:$true] %s340
      %s342 = sshll.u32 %s1, 4
      %s343 = int_to_ptr.hbm [resolvable:$true] %s342
      %345 = dma.vmem_to_hbm [thread:$0]  %s341, 128, %s343, [#allocation4]
    $region21: #{tpu_custom_call.1} parent=1 // pred_fallthru
      _
    // Predicated region
    $region22: #{tpu_custom_call.1} parent=1 // pred_check
      _
    $region23: #{tpu_custom_call.1} parent=1 // pred_check_branch
      %347 = sbr.rel (0) target = $region25
    $region24: #{tpu_custom_call.1} parent=1 // pred_region
      %349 = dma.done [#allocation4], 128
    $region25: #{tpu_custom_call.1} parent=1 // pred_fallthru
      _
    %350 = vsyncpa [#allocation3], 1
    %351 = vsyncpa [#allocation4], 1

</llo_original>
